<compile_context>
chip_gen: v7x
topology: tpu7x:2x2x1
jax: 0.10.0
libtpu: 0.0.40
codegen_flags: <defaults>
</compile_context>

<pallas_src>
from functools import partial

import numpy as np
import jax
import jax.numpy as jnp
from jax.experimental import pallas as pl
from jax.experimental.pallas import tpu as pltpu


def _round_up(x, m):
    return (x + m - 1) // m * m


def _divisors(n):
    return [d for d in range(1, n + 1) if n % d == 0]


def _vmem_limit_bytes():
    """Generation-aware VMEM limit: ~75% of physical per-core VMEM."""
    try:
        cap = int(pltpu.get_tpu_info().vmem_capacity_bytes)
    except Exception:
        cap = 64 * 2 ** 20          # conservative default (v7x per-core VMEM)
    return int(cap * 3 // 4)        # 96 MiB on v5e/v6e (128), 48 MiB on v7x (64)


def _pick_conv_row_tile(ho, wo1, bytes_per_th, budget, batch):
    """Largest legal divisor TH of Ho fitting the VMEM budget; prefer configs
    leaving >= 2 total grid steps so both v7x TensorCores are occupied."""
    legal = [t for t in _divisors(ho) if t == ho or (t * wo1) % 16 == 0]
    fitting = [t for t in legal if t * bytes_per_th <= budget]
    if not fitting:
        return min(legal)
    multi = [t for t in fitting if batch * (ho // t) >= 2]
    return max(multi) if multi else max(fitting)


def _pick_pool_tiles(n_img, ho, w2, wo, itemsize, budget):
    """(TH, TC) for the avg-pool grid.  TH % 8 == 0 keeps the in-kernel
    (TC, TH, x)->(TC*TH, x) reshape layout-free; otherwise fall back to
    full-height blocks with one image per step."""
    th_opts = sorted([t for t in _divisors(ho) if t % 8 == 0], reverse=True)
    if not th_opts:
        return ho, 1

    def blk_bytes(th, tc):
        # double-buffered input + output blocks plus the small pairing matrix
        return 2 * tc * th * (2 * w2 + wo) * itemsize + 2 * w2 * wo * 4

    th = next((t for t in th_opts if blk_bytes(t, 1) <= budget), th_opts[-1])
    tc_opts = sorted(_divisors(n_img), reverse=True)
    tc = next((c for c in tc_opts if blk_bytes(th, c) <= budget), 1)
    # keep >= 2 grid steps for megacore sharding when the problem allows it
    while tc > 1 and (n_img // tc) * (ho // th) < 2:
        tc = next(c for c in tc_opts if c < tc)
    return th, tc


# ----------------------------- Pallas kernels ------------------------------

def _conv3x3s2_kernel(x_ref, w_ref, b_ref, o_ref, shift_ref):
    """One (batch, output-row-block) tile of the 3x3 / stride-2 conv.

    x_ref:     (1, 2, R, 3*Cin) bf16  -- even / odd column-phase slabs; the
                                         3 kh taps are packed into the channel
                                         (contraction) axis.  R = TH*(Wo+1).
    w_ref:     (3, 3*Cin, Cp)   bf16  -- per-kw weight groups, Cout padded to Cp.
    b_ref:     (1, Cp)          bf16
    o_ref:     (1, R, Cp)       out dtype
    shift_ref: (Rs, Cp)         f32 scratch used for the kw==2 one-pixel shift.
    """
    r = x_ref.shape[2]
    cp = o_ref.shape[2]

    lhs_even = x_ref[0, 0]          # (R, 3*Cin): used by the kw=0 and kw=2 taps
    lhs_odd = x_ref[0, 1]           # (R, 3*Cin): kw=1 taps

    acc = jnp.dot(lhs_even, w_ref[0], preferred_element_type=jnp.float32)
    acc = acc + jnp.dot(lhs_odd, w_ref[1], preferred_element_type=jnp.float32)
    acc2 = jnp.dot(lhs_even, w_ref[2], preferred_element_type=jnp.float32)

    # out[p] += acc2[p + 1]: the kw==2 taps read the even column one output
    # pixel to the right.  Do the shift in-kernel via a pl.ds offset read; the
    # only element picking up the zeroed tail row lands on the junk wj==Wo
    # column, which the wrapper drops.
    shift_ref[pl.ds(r, 1), :] = jnp.zeros((1, cp), jnp.float32)
    shift_ref[pl.ds(0, r), :] = acc2
    acc = acc + shift_ref[pl.ds(1, r), :]

    o_ref[0] = (acc + b_ref[...].astype(jnp.float32)).astype(o_ref.dtype)


def _avgpool2x2_kernel(x_ref, p_ref, o_ref):
    """2x2 / stride-2 average pool on raw NCHW row blocks.

    x_ref: (TC, 2*TH, W2) -- W2 (even width) on lanes.
    p_ref: (W2, Wo)       -- 0.25-valued column-pairing matrix.
    o_ref: (TC, TH, Wo)
    """
    tc, th2, w2 = x_ref.shape
    th = th2 // 2
    wo = o_ref.shape[2]
    even = x_ref[:, pl.ds(0, th, stride=2), :].astype(jnp.float32)
    odd = x_ref[:, pl.ds(1, th, stride=2), :].astype(jnp.float32)
    rows = (even + odd).reshape(tc * th, w2)
    pooled = jnp.dot(rows, p_ref[...],
                     preferred_element_type=jnp.float32,
                     precision=jax.lax.Precision.HIGHEST)
    o_ref[...] = pooled.reshape(tc, th, wo).astype(o_ref.dtype)


# ------------------------------- wrappers -----------------------------------

@partial(jax.jit, static_argnames=("compute_dtype", "row_tile"))
def downsample_conv2d(x_nchw, weight, bias, *, compute_dtype=jnp.bfloat16,
                      row_tile=None):
    """nn.Conv2d(Cin, Cout, 3, stride=2, padding=1) on NCHW input."""
    B, C, H, W = x_nchw.shape
    C_out = weight.shape[0]
    Ho = (H - 1) // 2 + 1
    Wo = (W - 1) // 2 + 1
    Wo1 = Wo + 1
    Cp = _round_up(C_out, 128)              # lane-dense output stores
    out_dtype = x_nchw.dtype

    # ---- staging (one fused XLA pass replacing the NCHW->NHWC transpose) ----
    # xt[b, pw, ho*Wo1 + wj, kh*C + c] = padded_input[b, 2*ho+kh, 2*wj+pw, c]
    x = jnp.transpose(x_nchw, (0, 2, 3, 1))
    xp = jnp.pad(x, ((0, 0), (1, 2 * Ho - H), (1, 2 * Wo1 - 1 - W), (0, 0)))

    def phase(pw):
        cols = xp[:, :, pw::2, :]                                 # (B,Hp,Wo1,C)
        slabs = [cols[:, kh:kh + 2 * Ho:2, :, :] for kh in range(3)]
        st = jnp.stack(slabs, axis=3)                             # (B,Ho,Wo1,3,C)
        return st.reshape(B, Ho * Wo1, 3 * C)

    xt = jnp.stack([phase(0), phase(1)], axis=1).astype(compute_dtype)

    # PyTorch OIHW -> (kw, 3*Cin, Cp) weight groups (kh packed into K), bf16.
    w = jnp.transpose(weight, (3, 2, 1, 0)).reshape(3, 3 * C, C_out)
    w = jnp.pad(w, ((0, 0), (0, 0), (0, Cp - C_out))).astype(compute_dtype)
    b2 = jnp.pad(bias, (0, Cp - C_out)).reshape(1, Cp).astype(compute_dtype)

    # ---- generation-aware VMEM budgeting / row tiling ----
    vmem_limit = _vmem_limit_bytes()
    act_bytes = jnp.dtype(compute_dtype).itemsize
    out_bytes = jnp.dtype(out_dtype).itemsize
    w_resident = 2 * (w.size + b2.size) * act_bytes        # double-buffered
    per_th = Wo1 * (2 * 2 * 3 * C * act_bytes              # 2-buffered input
                    + 2 * Cp * out_bytes                    # 2-buffered output
                    + Cp * 4)                               # shift scratch
    budget = max(2 * 2 ** 20, vmem_limit - int(w_resident) - 2 * 2 ** 20)
    TH = row_tile or _pick_conv_row_tile(Ho, Wo1, per_th, budget, B)
    NRB = Ho // TH
    R = TH * Wo1
    Rs = _round_up(R + 1, 8)

    out = pl.pallas_call(
        _conv3x3s2_kernel,
        out_shape=jax.ShapeDtypeStruct((B, Ho * Wo1, Cp), out_dtype),
        grid=(B, NRB),
        in_specs=[
            pl.BlockSpec((1, 2, R, 3 * C), lambda b, r: (b, 0, r, 0)),
            pl.BlockSpec((3, 3 * C, Cp), lambda b, r: (0, 0, 0)),
            pl.BlockSpec((1, Cp), lambda b, r: (0, 0)),
        ],
        out_specs=pl.BlockSpec((1, R, Cp), lambda b, r: (b, r, 0)),
        scratch_shapes=[pltpu.VMEM((Rs, Cp), jnp.float32)],
        compiler_params=pltpu.CompilerParams(
            dimension_semantics=("parallel", "parallel"),
            vmem_limit_bytes=vmem_limit,
        ),
        cost_estimate=pl.CostEstimate(
            flops=int(2 * B * Ho * Wo1 * 9 * C * Cp),
            transcendentals=0,
            bytes_accessed=int(xt.size * act_bytes + w.size * act_bytes
                               + b2.size * act_bytes
                               + B * Ho * Wo1 * Cp * out_bytes),
        ),
    )(xt, w, b2)

    # Drop the junk wj == Wo column / padded channels; back to NCHW.
    y = out.reshape(B, Ho, Wo1, Cp)[:, :, :Wo, :C_out]
    return jnp.transpose(y, (0, 3, 1, 2))


@partial(jax.jit, static_argnames=("tiles",))
def downsample_avgpool2d(x_nchw, *, tiles=None):
    """nn.AvgPool2d(kernel_size=2, stride=2) on NCHW input."""
    B, C, H, W = x_nchw.shape
    Ho, Wo = H // 2, W // 2
    H2, W2 = 2 * Ho, 2 * Wo
    x = x_nchw if (H == H2 and W == W2) else x_nchw[:, :, :H2, :W2]   # floor()
    x2 = x.reshape(B * C, H2, W2)
    n_img = B * C

    # 0.25-valued column-pairing matrix: out[., wo] = .25*(in[., 2wo]+in[., 2wo+1])
    col = jnp.arange(W2) // 2
    p = (col[:, None] == jnp.arange(Wo)[None, :]).astype(jnp.float32) * 0.25

    itemsize = jnp.dtype(x2.dtype).itemsize
    vmem_limit = _vmem_limit_bytes()
    budget = max(2 * 2 ** 20, vmem_limit - 2 * 2 ** 20)
    TH, TC = tiles or _pick_pool_tiles(n_img, Ho, W2, Wo, itemsize, budget)

    out = pl.pallas_call(
        _avgpool2x2_kernel,
        out_shape=jax.ShapeDtypeStruct((n_img, Ho, Wo), x_nchw.dtype),
        grid=(n_img // TC, Ho // TH),
        in_specs=[
            pl.BlockSpec((TC, 2 * TH, W2), lambda c, r: (c, r, 0)),
            pl.BlockSpec((W2, Wo), lambda c, r: (0, 0)),
        ],
        out_specs=pl.BlockSpec((TC, TH, Wo), lambda c, r: (c, r, 0)),
        compiler_params=pltpu.CompilerParams(
            dimension_semantics=("parallel", "parallel"),
            vmem_limit_bytes=vmem_limit,
        ),
    )(x2, p)

    return out.reshape(B, C, Ho, Wo)


class Downsample:
    """Mirror of the PyTorch Downsample module (dims=2)."""

    def __init__(self, channels, use_conv, dims=2, out_channels=None, key=None):
        assert dims == 2, "only the 2-D path is implemented"
        self.channels = channels
        self.out_channels = out_channels or channels
        self.use_conv = use_conv
        self.dims = dims
        if use_conv:
            key = key if key is not None else jax.random.PRNGKey(0)
            kw, kb = jax.random.split(key)
            fan_in = channels * 3 * 3
            bound = 1.0 / np.sqrt(fan_in)   # PyTorch Conv2d default init range
            self.weight = jax.random.uniform(
                kw, (self.out_channels, channels, 3, 3), jnp.float32,
                -bound, bound)
            self.bias = jax.random.uniform(
                kb, (self.out_channels,), jnp.float32, -bound, bound)
        else:
            assert self.channels == self.out_channels
            self.weight = None
            self.bias = None

    def __call__(self, x):
        assert x.shape[1] == self.channels
        if self.use_conv:
            return downsample_conv2d(x, self.weight, self.bias)
        return downsample_avgpool2d(x)


# --------------------------------- main --------------------------------------

if __name__ == "__main__":
    key = jax.random.PRNGKey(0)
    kx, kp = jax.random.split(key)

    B, C, H, W = 2, 4, 16, 16
    x = jax.random.normal(kx, (B, C, H, W), jnp.float32)

    # use_conv=True path (Conv2d(C, C, 3, stride=2, padding=1), bf16 compute)
    ds_conv = Downsample(C, use_conv=True, dims=2, key=kp)
    y_conv = jax.block_until_ready(ds_conv(x))
    assert y_conv.shape == (B, C, H // 2, W // 2)
    # Reference on the same bf16-quantized inputs (f32 accumulation).
    xq = x.astype(jnp.bfloat16).astype(jnp.float32)
    wq = ds_conv.weight.astype(jnp.bfloat16).astype(jnp.float32)
    bq = ds_conv.bias.astype(jnp.bfloat16).astype(jnp.float32)
    ref_conv = jax.lax.conv_general_dilated(
        xq, wq, window_strides=(2, 2), padding=((1, 1), (1, 1)),
        dimension_numbers=("NCHW", "OIHW", "NCHW"),
        precision=jax.lax.Precision.HIGHEST,
    ) + bq[None, :, None, None]
    np.testing.assert_allclose(np.asarray(y_conv), np.asarray(ref_conv),
                               atol=2e-3, rtol=2e-3)

    # use_conv=False path (AvgPool2d(kernel_size=2, stride=2))
    ds_pool = Downsample(C, use_conv=False, dims=2)
    y_pool = jax.block_until_ready(ds_pool(x))
    assert y_pool.shape == (B, C, H // 2, W // 2)
    ref_pool = x.reshape(B, C, H // 2, 2, W // 2, 2).mean(axis=(3, 5))
    np.testing.assert_allclose(np.asarray(y_pool), np.asarray(ref_pool),
                               atol=1e-4, rtol=1e-4)

    print("KERNEL_OK")
</pallas_src>

<mosaic_0001>
module attributes {stable_mosaic.version = 11 : i64} {
  func.func @_conv3x3s2_kernel(%arg0: i32, %arg1: i32, %arg2: memref<1x2x72x12xbf16, #tpu.memory_space<vmem>>, %arg3: memref<3x12x128xbf16, #tpu.memory_space<vmem>>, %arg4: memref<1x128xbf16, #tpu.memory_space<vmem>>, %arg5: memref<1x72x128xf32, #tpu.memory_space<vmem>>, %arg6: memref<80x128xf32, #tpu.memory_space<vmem>>) attributes {dimension_semantics = [#tpu.dimension_semantics<parallel>, #tpu.dimension_semantics<parallel>], iteration_bounds = array<i64: 2, 1>, scalar_prefetch = 0 : i64, scratch_operands = 1 : i64, tpu.core_type = #tpu.core_type<tc>, window_params = [{transform_indices = @transform_0, window_bounds = array<i64: 1, 2, 72, 12>}, {pipeline_mode = #tpu.pipeline_mode<synchronous>, transform_indices = @transform_1, window_bounds = array<i64: 3, 12, 128>}, {pipeline_mode = #tpu.pipeline_mode<synchronous>, transform_indices = @transform_2, window_bounds = array<i64: 1, 128>}, {transform_indices = @transform_3, window_bounds = array<i64: 1, 72, 128>}]} {
    %c0 = arith.constant 0 : index
    %c0_0 = arith.constant 0 : index
    %c0_1 = arith.constant 0 : index
    %c0_2 = arith.constant 0 : index
    %0 = vector.load %arg2[%c0, %c0_0, %c0_1, %c0_2] : memref<1x2x72x12xbf16, #tpu.memory_space<vmem>>, vector<1x1x72x12xbf16>
    %1 = vector.shape_cast %0 : vector<1x1x72x12xbf16> to vector<72x12xbf16>
    %c0_3 = arith.constant 0 : index
    %c1 = arith.constant 1 : index
    %c0_4 = arith.constant 0 : index
    %c0_5 = arith.constant 0 : index
    %2 = vector.load %arg2[%c0_3, %c1, %c0_4, %c0_5] : memref<1x2x72x12xbf16, #tpu.memory_space<vmem>>, vector<1x1x72x12xbf16>
    %3 = vector.shape_cast %2 : vector<1x1x72x12xbf16> to vector<72x12xbf16>
    %c0_6 = arith.constant 0 : index
    %c0_7 = arith.constant 0 : index
    %c0_8 = arith.constant 0 : index
    %4 = vector.load %arg3[%c0_6, %c0_7, %c0_8] : memref<3x12x128xbf16, #tpu.memory_space<vmem>>, vector<1x12x128xbf16>
    %5 = vector.shape_cast %4 : vector<1x12x128xbf16> to vector<12x128xbf16>
    %cst = arith.constant dense<0.000000e+00> : vector<72x128xf32>
    %6 = tpu.matmul %1, %5, %cst {dimension_numbers = #tpu.dot_dimension_numbers<[1], [0], [0], [1], [0, 0, 1, 1], [], []>} : vector<72x12xbf16>, vector<12x128xbf16>, vector<72x128xf32> -> vector<72x128xf32>
    %c1_9 = arith.constant 1 : index
    %c0_10 = arith.constant 0 : index
    %c0_11 = arith.constant 0 : index
    %7 = vector.load %arg3[%c1_9, %c0_10, %c0_11] : memref<3x12x128xbf16, #tpu.memory_space<vmem>>, vector<1x12x128xbf16>
    %8 = vector.shape_cast %7 : vector<1x12x128xbf16> to vector<12x128xbf16>
    %cst_12 = arith.constant dense<0.000000e+00> : vector<72x128xf32>
    %9 = tpu.matmul %3, %8, %cst_12 {dimension_numbers = #tpu.dot_dimension_numbers<[1], [0], [0], [1], [0, 0, 1, 1], [], []>} : vector<72x12xbf16>, vector<12x128xbf16>, vector<72x128xf32> -> vector<72x128xf32>
    %10 = arith.addf %6, %9 : vector<72x128xf32>
    %c2 = arith.constant 2 : index
    %c0_13 = arith.constant 0 : index
    %c0_14 = arith.constant 0 : index
    %11 = vector.load %arg3[%c2, %c0_13, %c0_14] : memref<3x12x128xbf16, #tpu.memory_space<vmem>>, vector<1x12x128xbf16>
    %12 = vector.shape_cast %11 : vector<1x12x128xbf16> to vector<12x128xbf16>
    %cst_15 = arith.constant dense<0.000000e+00> : vector<72x128xf32>
    %13 = tpu.matmul %1, %12, %cst_15 {dimension_numbers = #tpu.dot_dimension_numbers<[1], [0], [0], [1], [0, 0, 1, 1], [], []>} : vector<72x12xbf16>, vector<12x128xbf16>, vector<72x128xf32> -> vector<72x128xf32>
    %cst_16 = arith.constant 0.000000e+00 : f32
    %14 = vector.broadcast %cst_16 : f32 to vector<1x128xf32>
    %c72 = arith.constant 72 : index
    %c0_17 = arith.constant 0 : index
    %15 = vector.load %arg6[%c72, %c0_17] : memref<80x128xf32, #tpu.memory_space<vmem>>, vector<1x128xf32>
    tpu.vector_store %arg6[%c72, %c0_17], %14 {strides = array<i32>} : memref<80x128xf32, #tpu.memory_space<vmem>>, vector<1x128xf32>,
    %c0_18 = arith.constant 0 : index
    %c0_19 = arith.constant 0 : index
    %16 = vector.load %arg6[%c0_18, %c0_19] : memref<80x128xf32, #tpu.memory_space<vmem>>, vector<72x128xf32>
    tpu.vector_store %arg6[%c0_18, %c0_19], %13 {strides = array<i32>} : memref<80x128xf32, #tpu.memory_space<vmem>>, vector<72x128xf32>,
    %c1_20 = arith.constant 1 : index
    %c0_21 = arith.constant 0 : index
    %17 = vector.load %arg6[%c1_20, %c0_21] : memref<80x128xf32, #tpu.memory_space<vmem>>, vector<72x128xf32>
    %18 = arith.addf %10, %17 : vector<72x128xf32>
    %c0_22 = arith.constant 0 : index
    %c0_23 = arith.constant 0 : index
    %19 = vector.load %arg4[%c0_22, %c0_23] : memref<1x128xbf16, #tpu.memory_space<vmem>>, vector<1x128xbf16>
    %20 = arith.extf %19 : vector<1x128xbf16> to vector<1x128xf32>
    %21 = vector.broadcast %20 : vector<1x128xf32> to vector<72x128xf32>
    %22 = arith.addf %18, %21 : vector<72x128xf32>
    %c0_24 = arith.constant 0 : index
    %c0_25 = arith.constant 0 : index
    %c0_26 = arith.constant 0 : index
    %23 = vector.load %arg5[%c0_24, %c0_25, %c0_26] : memref<1x72x128xf32, #tpu.memory_space<vmem>>, vector<1x72x128xf32>
    %24 = vector.shape_cast %23 : vector<1x72x128xf32> to vector<72x128xf32>
    %25 = vector.shape_cast %22 : vector<72x128xf32> to vector<1x72x128xf32>
    tpu.vector_store %arg5[%c0_24, %c0_25, %c0_26], %25 {strides = array<i32>} : memref<1x72x128xf32, #tpu.memory_space<vmem>>, vector<1x72x128xf32>,
    return
  }
  func.func @transform_0(%arg0: i32, %arg1: i32) -> (i32, i32, i32, i32) {
    %c0_i32 = arith.constant 0 : i32
    %c0_i32_0 = arith.constant 0 : i32
    %c0_i32_1 = arith.constant 0 : i32
    return %arg0, %c0_i32, %arg1, %c0_i32_0 : i32, i32, i32, i32
  }
  func.func @transform_1(%arg0: i32, %arg1: i32) -> (i32, i32, i32) {
    %c0_i32 = arith.constant 0 : i32
    %c0_i32_0 = arith.constant 0 : i32
    %c0_i32_1 = arith.constant 0 : i32
    %c0_i32_2 = arith.constant 0 : i32
    return %c0_i32, %c0_i32_0, %c0_i32_1 : i32, i32, i32
  }
  func.func @transform_2(%arg0: i32, %arg1: i32) -> (i32, i32) {
    %c0_i32 = arith.constant 0 : i32
    %c0_i32_0 = arith.constant 0 : i32
    %c0_i32_1 = arith.constant 0 : i32
    return %c0_i32, %c0_i32_0 : i32, i32
  }
  func.func @transform_3(%arg0: i32, %arg1: i32) -> (i32, i32, i32) {
    %c0_i32 = arith.constant 0 : i32
    %c0_i32_0 = arith.constant 0 : i32
    return %arg0, %arg1, %c0_i32 : i32, i32, i32
  }
}

</mosaic_0001>

<llo_original>
// kernel: downsample_conv2d.1
$region0: #{downsample_conv2d.1}
  #allocation0 [shape = 'u32[]', space=smem, size = 0x4, offset = 0x4, fixed_abs, tag = 'smem constant byte address 0x4 - core index']
  #allocation1 [shape = 'u32[144,128]{1,0:T(1,128)}', space=vmem, size = 0x12000, scoped, tag = 'internal scratch']
  #allocation2 [shape = 'f32[80,128]{1,0:T(8,128)}', space=vmem, size = 0xa000, scoped, tag = 'scratch operand']
  %s0 = inlined_call_operand.vmem [shape: bf16[2,2,72,12], index: 0, kind: input, shape index: {}]
  %s1 = inlined_call_operand.vmem [shape: bf16[3,12,128], index: 1, kind: input, shape index: {}]
  %s2 = inlined_call_operand.vmem [shape: bf16[1,128], index: 2, kind: input, shape index: {}]
  %s3 = inlined_call_operand.vmem [shape: f32[2,72,128], index: 3, kind: output, shape index: {}]
  %s4 = sld [smem:[#allocation0]]
  $region45: #{downsample_conv2d.1} parent=0
    _
  %s6 = ssub.s32 1, %s4
  %s7 = scalar_select 0, %s6, %s4
  loop: start=0, step=1, limit=4
  $region2: #{downsample_conv2d.1} parent=0 // loop_pre_header
    _
  $region3: #{downsample_conv2d.1} parent=0 // loop_header
    %s9 = sphi 0, %s13
    %p10 = scmp.ge.s32.totalorder %s9, 4
    %s16 = sphi 0, %s28
    %s17 = sphi 0, %s24
    %s18 = sphi 0, %s16
    %s19 = sphi 0, %s17
    %s20 = sphi 0, %s18
    %s21 = sphi 0, %s19
    %s33 = sphi 0, %s35
    %s36 = sphi 0, %s33
    %s37 = sphi 0, %s36
    %s53 = sphi 0, %s37
    %s57 = sphi 0, %s57
    %s59 = sphi 0, %s57
    %s60 = sphi 0, %s59
    %s74 = sphi 0, %s60
    %s78 = sphi 0, %s78
    %s80 = sphi 0, %s78
    %s81 = sphi 0, %s80
    %s95 = sphi 0, %s81
    %s103 = sphi 0, %s105
    %s106 = sphi 0, %s103
    %s107 = sphi 0, %s106
    %s123 = sphi 0, %s107
  $region4: #{downsample_conv2d.1} parent=0 // loop_header_branch
    %12 = sbr.rel (%p10) target = $region8
  $region5: #{downsample_conv2d.1} parent=0 // loop_body
    %s14 = ssub.s32 %s9, 1
    %s15 = ssub.s32 %s9, 2
    %s22 = sadd.s32 1, %s17
    %p23 = scmp.ge.s32.totalorder %s22, 1
    %s24 = scalar_select %p23, 0, %s22
    %s25 = sadd.s32 1, %s16
    %s26 = scalar_select %p23, %s25, %s16
    %p27 = scmp.ge.s32.totalorder %s26, 2
    %s28 = scalar_select %p27, 0, %s26
    %s29 = ssub.s32 %s16, %s28
    %s30 = ssub.s32 %s17, %s24
    %s31 = sor.u32 %s29, %s30
    %p32 = scmp.eq.s32.totalorder %s31, 0
    %s34 = sadd.s32 %s33, 1
    %s35 = scalar_select %p32, %s33, %s34
    %p38 = pneg %p32
    %p39 = scmp.eq.s32.totalorder %s9, 1
    %p40 = por %p38, %p39
    %p41 = scmp.ne.s32.totalorder %s33, %s36
    %p42 = scmp.eq.s32.totalorder %s9, 0
    %p43 = por %p41, %p42
    %p44 = scmp.ne.s32.totalorder %s33, %s36
    %p45 = scmp.eq.s32.totalorder %s14, 1
    %p46 = por %p44, %p45
    %p47 = scmp.ne.s32.totalorder %s36, %s37
    %p48 = scmp.eq.s32.totalorder %s14, 0
    %p49 = por %p47, %p48
    %p50 = scmp.ne.s32.totalorder %s36, %s37
    %p51 = scmp.eq.s32.totalorder %s15, 1
    %p52 = por %p50, %p51
    %p54 = scmp.ne.s32.totalorder %s37, %s53
    %p55 = scmp.eq.s32.totalorder %s15, 0
    %p56 = por %p54, %p55
    %s58 = sadd.s32 %s57, 1
    %p61 = scmp.eq.s32.totalorder %s9, 1
    %p62 = scmp.ne.s32.totalorder %s57, %s59
    %p63 = scmp.eq.s32.totalorder %s9, 0
    %p64 = por %p62, %p63
    %p65 = scmp.ne.s32.totalorder %s57, %s59
    %p66 = scmp.eq.s32.totalorder %s14, 1
    %p67 = por %p65, %p66
    %p68 = scmp.ne.s32.totalorder %s59, %s60
    %p69 = scmp.eq.s32.totalorder %s14, 0
    %p70 = por %p68, %p69
    %p71 = scmp.ne.s32.totalorder %s59, %s60
    %p72 = scmp.eq.s32.totalorder %s15, 1
    %p73 = por %p71, %p72
    %p75 = scmp.ne.s32.totalorder %s60, %s74
    %p76 = scmp.eq.s32.totalorder %s15, 0
    %p77 = por %p75, %p76
    %s79 = sadd.s32 %s78, 1
    %p82 = scmp.eq.s32.totalorder %s9, 1
    %p83 = scmp.ne.s32.totalorder %s78, %s80
    %p84 = scmp.eq.s32.totalorder %s9, 0
    %p85 = por %p83, %p84
    %p86 = scmp.ne.s32.totalorder %s78, %s80
    %p87 = scmp.eq.s32.totalorder %s14, 1
    %p88 = por %p86, %p87
    %p89 = scmp.ne.s32.totalorder %s80, %s81
    %p90 = scmp.eq.s32.totalorder %s14, 0
    %p91 = por %p89, %p90
    %p92 = scmp.ne.s32.totalorder %s80, %s81
    %p93 = scmp.eq.s32.totalorder %s15, 1
    %p94 = por %p92, %p93
    %p96 = scmp.ne.s32.totalorder %s81, %s95
    %p97 = scmp.eq.s32.totalorder %s15, 0
    %p98 = por %p96, %p97
    %s99 = ssub.s32 %s16, %s28
    %s100 = ssub.s32 %s17, %s24
    %s101 = sor.u32 %s99, %s100
    %p102 = scmp.eq.s32.totalorder %s101, 0
    %s104 = sadd.s32 %s103, 1
    %s105 = scalar_select %p102, %s103, %s104
    %p108 = pneg %p102
    %p109 = scmp.eq.s32.totalorder %s9, 1
    %p110 = por %p108, %p109
    %p111 = scmp.ne.s32.totalorder %s103, %s106
    %p112 = scmp.eq.s32.totalorder %s9, 0
    %p113 = por %p111, %p112
    %p114 = scmp.ne.s32.totalorder %s103, %s106
    %p115 = scmp.eq.s32.totalorder %s14, 1
    %p116 = por %p114, %p115
    %p117 = scmp.ne.s32.totalorder %s106, %s107
    %p118 = scmp.eq.s32.totalorder %s14, 0
    %p119 = por %p117, %p118
    %p120 = scmp.ne.s32.totalorder %s106, %s107
    %p121 = scmp.eq.s32.totalorder %s15, 1
    %p122 = por %p120, %p121
    %p124 = scmp.ne.s32.totalorder %s107, %s123
    %p125 = scmp.eq.s32.totalorder %s15, 0
    %p126 = por %p124, %p125
    %p127 = scmp.le.s32.totalorder 1, %s9
    %p128 = scmp.lt.s32.totalorder %s9, 3
    %p129 = pnand %p127, %p128
    %p130 = pneg %p129
    // Predicated region
    $region9: #{downsample_conv2d.1} parent=5 // pred_check
      _
    $region10: #{downsample_conv2d.1} parent=5 // pred_check_branch
      %132 = sbr.rel (%p129) target = $region12
    $region11: #{downsample_conv2d.1} parent=5 // pred_region
      %s133 = ssub.s32 %s9, 1
      // Predicated region
      $region13: #{downsample_conv2d.1} parent=11 // pred_check
        %p134 = pneg %p70
      $region14: #{downsample_conv2d.1} parent=11 // pred_check_branch
        %136 = sbr.rel (%p134) target = $region16
      $region15: #{downsample_conv2d.1} parent=11 // pred_region
        _
      $region16: #{downsample_conv2d.1} parent=11 // pred_fallthru
        _
      // Predicated region
      $region17: #{downsample_conv2d.1} parent=11 // pred_check
        %p137 = pneg %p91
      $region18: #{downsample_conv2d.1} parent=11 // pred_check_branch
        %139 = sbr.rel (%p137) target = $region20
      $region19: #{downsample_conv2d.1} parent=11 // pred_region
        _
      $region20: #{downsample_conv2d.1} parent=11 // pred_fallthru
        _
    $region12: #{downsample_conv2d.1} parent=5 // pred_fallthru
      _
    %p140 = scmp.lt.s32.totalorder %s9, 2
    // Predicated region
    $region21: #{downsample_conv2d.1} parent=5 // pred_check
      %p141 = pneg %p140
    $region22: #{downsample_conv2d.1} parent=5 // pred_check_branch
      %143 = sbr.rel (%p141) target = $region24
    $region23: #{downsample_conv2d.1} parent=5 // pred_region
      // Predicated region
      $region25: #{downsample_conv2d.1} parent=23 // pred_check
        %p144 = pneg %p43
      $region26: #{downsample_conv2d.1} parent=23 // pred_check_branch
        %146 = sbr.rel (%p144) target = $region28
      $region27: #{downsample_conv2d.1} parent=23 // pred_region
        %s147 = smul.u32 9, %s17
        %p148 = scmp.lt.s32.totalorder %s16, 1
        %s149 = scalar_select %p148, %s16, 1
        %p150 = scmp.lt.s32.totalorder %s147, 8
        %s151 = scalar_select %p150, %s147, 8
        %s152 = smul.addr %s149, 18
        %s153 = sadd.s32 %s151, %s152
        %s154 = smul.addr %s153, 4
        %s155 = scalar_lea.vmem %s0, %s154
        %s156 = smul.u32 9, %s17
      $region28: #{downsample_conv2d.1} parent=23 // pred_fallthru
        _
    $region24: #{downsample_conv2d.1} parent=5 // pred_fallthru
      _
    %p157 = scmp.le.s32.totalorder 1, %s9
    %p158 = scmp.lt.s32.totalorder %s9, 3
    %p159 = pnand %p157, %p158
    %p160 = pneg %p159
    // Predicated region
    $region29: #{downsample_conv2d.1} parent=5 // pred_check
      _
    $region30: #{downsample_conv2d.1} parent=5 // pred_check_branch
      %162 = sbr.rel (%p159) target = $region32
    $region31: #{downsample_conv2d.1} parent=5 // pred_region
      %s163 = ssub.s32 %s9, 1
      %s164 = smul.u32 9, %s19
      %p165 = scmp.lt.s32.totalorder %s18, 1
      %s166 = scalar_select %p165, %s18, 1
      %p167 = scmp.lt.s32.totalorder %s164, 8
      %s168 = scalar_select %p167, %s164, 8
      %s169 = smul.addr %s166, 18
      %s170 = sadd.s32 %s168, %s169
      %s171 = smul.addr %s170, 4
      %s172 = scalar_lea.vmem %s0, %s171
      %p173 = pneg %p49
      %p174 = pneg %p46
      %p175 = pneg %p70
      %p176 = pneg %p67
      %p177 = pneg %p91
      %p178 = pneg %p88
      %p179 = pneg %p119
      %p180 = pneg %p116
      %s181 = smul.u32 9, %s19
      %p182 = scmp.lt.s32.totalorder %s18, 1
      %s183 = scalar_select %p182, %s18, 1
      %p184 = scmp.lt.s32.totalorder %s181, 8
      %s185 = scalar_select %p184, %s181, 8
      %s186 = smul.addr %s183, 9
      %s187 = sadd.s32 %s185, %s186
      %s188 = smul.addr %s187, 8
      %s189 = scalar_lea.vmem %s3, %s188
      %s190 = smul.u32 9, %s19
      %p191 = scmp.lt.s32.totalorder %s18, 1
      %s192 = scalar_select %p191, %s18, 1
      %p193 = scmp.lt.s32.totalorder %s190, 8
      %s194 = scalar_select %p193, %s190, 8
      %s195 = smul.addr %s192, 18
      %s196 = sadd.s32 %s194, %s195
      %s197 = smul.addr %s196, 4
      %s198 = scalar_lea.vmem %s0, %s197
      %s199 = smul.u32 9, %s19
      %s200 = smul.u32 9, %s19
      %p201 = scmp.lt.s32.totalorder %s18, 1
      %s202 = scalar_select %p201, %s18, 1
      %p203 = scmp.lt.s32.totalorder %s200, 8
      %s204 = scalar_select %p203, %s200, 8
      %s205 = smul.addr %s202, 9
      %s206 = sadd.s32 %s204, %s205
      %s207 = smul.addr %s206, 8
      %s208 = scalar_lea.vmem %s3, %s207
      %s209 = smul.u32 9, %s19
      %v211 = vld [vmem:[%s198] sm:$0xf]
      %v212 = vld [vmem:[%s198 + $0x4] sm:$0xf]
      %v213 = vld [vmem:[%s198 + $0x8] sm:$0xf]
      %v214 = vld [vmem:[%s198 + $0xc] sm:$0xf]
      %v215 = vld [vmem:[%s198 + $0x10] sm:$0xf]
      %v216 = vld [vmem:[%s198 + $0x14] sm:$0xf]
      %v217 = vld [vmem:[%s198 + $0x18] sm:$0xf]
      %v218 = vld [vmem:[%s198 + $0x1c] sm:$0xf]
      %v219 = vld [vmem:[%s198 + $0x20] sm:$0xf]
      %s220 = scalar_lea.vmem %s198, 36
      %v221 = vld [vmem:[%s220] sm:$0xf]
      %v222 = vld [vmem:[%s220 + $0x4] sm:$0xf]
      %v223 = vld [vmem:[%s220 + $0x8] sm:$0xf]
      %v224 = vld [vmem:[%s220 + $0xc] sm:$0xf]
      %v225 = vld [vmem:[%s220 + $0x10] sm:$0xf]
      %v226 = vld [vmem:[%s220 + $0x14] sm:$0xf]
      %v227 = vld [vmem:[%s220 + $0x18] sm:$0xf]
      %v228 = vld [vmem:[%s220 + $0x1c] sm:$0xf]
      %v229 = vld [vmem:[%s220 + $0x20] sm:$0xf]
      %v230 = vld [vmem:[%s1] sm:$0xf]
      %v231 = vld [vmem:[%s1 + $0x4] sm:$0x3]
      %s232 = scalar_lea.vmem %s1, 8
      %v233 = vld [vmem:[%s232] sm:$0xf]
      %v234 = vld [vmem:[%s232 + $0x4] sm:$0x3]
      %v244 = vunpack.c.l.b16 %v221
      %v245 = vunpack.c.l.b16 %v222
      %v246 = vunpack.c.l.b16 %v223
      %v247 = vunpack.c.l.b16 %v224
      %v248 = vunpack.c.l.b16 %v225
      %v249 = vunpack.c.l.b16 %v226
      %v250 = vunpack.c.l.b16 %v227
      %v251 = vunpack.c.l.b16 %v228
      %v252 = vunpack.c.l.b16 %v229
      %v253 = vpack.c.b16 %v245, %v244
      %v254 = vpack.c.b16 %v247, %v246
      %v255 = vpack.c.b16 %v249, %v248
      %v256 = vpack.c.b16 %v251, %v250
      %v257 = vpack.c.b16 %v252, %v252
      %v260 = vunpack.c.l.b16 %v233
      %v261 = vunpack.c.l.b16 %v234
      %v262 = vpack.c.b16 %v261, %v260
      %vm263 = vcmask 97280
      %v265 = vsel %vm263, %v253, 0
      %v268 = vsel %vm263, %v254, 0
      %v271 = vsel %vm263, %v255, 0
      %v274 = vsel %vm263, %v256, 0
      %v277 = vsel %vm263, %v257, 0
      %vm279 = vcmask 1045504
      %v281 = vsel %vm279, %v262, 0
      %283 = vmatprep.subr.bf16.mxu0 0
      %284 = vmatpush1.bf16.msra.mxu0 %v281
      %285 = vmatprep.subr.bf16.mxu0 0
      %286 = vmatpush1.bf16.msra.mxu0 0
      %287 = vmatprep.subr.bf16.mxu0 0
      %288 = vmatpush1.bf16.msra.mxu0 0
      %289 = vmatprep.subr.bf16.mxu0 0
      %290 = vmatpush1.bf16.msra.mxu0 0
      %291 = vmatprep.subr.bf16.mxu0 0
      %292 = vmatpush1.bf16.msra.mxu0 0
      %293 = vmatprep.subr.bf16.mxu0 0
      %294 = vmatpush1.bf16.msra.mxu0 0
      %295 = vmatprep.subr.bf16.mxu0 0
      %296 = vmatpush1.bf16.msra.mxu0 0
      %297 = vmatprep.subr.bf16.mxu0 0
      %298 = vmatpush1.bf16.msra.mxu0 0
      %299 = vmatprep.subr.bf16.mxu0 0
      %300 = vmatpush1.bf16.msra.mxu0 0
      %301 = vmatprep.subr.bf16.mxu0 0
      %302 = vmatpush1.bf16.msra.mxu0 0
      %303 = vmatprep.subr.bf16.mxu0 0
      %304 = vmatpush1.bf16.msra.mxu0 0
      %305 = vmatprep.subr.bf16.mxu0 0
      %306 = vmatpush1.bf16.msra.mxu0 0
      %307 = vmatprep.subr.bf16.mxu0 0
      %308 = vmatpush1.bf16.msra.mxu0 0
      %309 = vmatprep.subr.bf16.mxu0 0
      %310 = vmatpush1.bf16.msra.mxu0 0
      %311 = vmatprep.subr.bf16.mxu0 0
      %312 = vmatpush1.bf16.msra.mxu0 0
      %313 = vmatprep.subr.bf16.mxu0 0
      %314 = vmatpush1.bf16.msra.mxu0 0
      %315 = vmatprep.mubr.bf16.mxu0 0
      %316 = vmatmul.mubr.bf16.gmra.mrb[0].mxu0 %v265
      %v317 = vpop.f32.mrb[0].mxu0
      %v318 = vadd.f32 0.0, %v317
      %v319 = vpop.f32.mrb[0].mxu0
      %v320 = vpop.f32.mrb[0].mxu0
      %v321 = vadd.f32 0.0, %v320
      %v322 = vpop.f32.mrb[0].mxu0
      %323 = vmatprep.mubr.bf16.mxu0 0
      %324 = vmatmul.mubr.bf16.gmra.mrb[0].mxu0 %v268
      %v325 = vpop.f32.mrb[0].mxu0
      %v326 = vadd.f32 0.0, %v325
      %v327 = vpop.f32.mrb[0].mxu0
      %v328 = vpop.f32.mrb[0].mxu0
      %v329 = vadd.f32 0.0, %v328
      %v330 = vpop.f32.mrb[0].mxu0
      %331 = vmatprep.mubr.bf16.mxu0 0
      %332 = vmatmul.mubr.bf16.gmra.mrb[0].mxu0 %v271
      %v333 = vpop.f32.mrb[0].mxu0
      %v334 = vadd.f32 0.0, %v333
      %v335 = vpop.f32.mrb[0].mxu0
      %v336 = vpop.f32.mrb[0].mxu0
      %v337 = vadd.f32 0.0, %v336
      %v338 = vpop.f32.mrb[0].mxu0
      %339 = vmatprep.mubr.bf16.mxu0 0
      %340 = vmatmul.mubr.bf16.gmra.mrb[0].mxu0 %v274
      %v341 = vpop.f32.mrb[0].mxu0
      %v342 = vadd.f32 0.0, %v341
      %v343 = vpop.f32.mrb[0].mxu0
      %v344 = vpop.f32.mrb[0].mxu0
      %v345 = vadd.f32 0.0, %v344
      %v346 = vpop.f32.mrb[0].mxu0
      %347 = vmatprep.mubr.bf16.mxu0 0
      %348 = vmatmul.mubr.bf16.gmra.mrb[0].mxu0 %v277
      %v349 = vpop.f32.mrb[0].mxu0
      %v350 = vadd.f32 0.0, %v349
      %v351 = vpop.f32.mrb[0].mxu0
      %v352 = vpop.f32.mrb[0].mxu0
      %v353 = vpop.f32.mrb[0].mxu0
      %354 = vdwg.mxu0
      %v364 = vunpack.c.l.b16 %v211
      %v365 = vunpack.c.l.b16 %v212
      %v366 = vunpack.c.l.b16 %v213
      %v367 = vunpack.c.l.b16 %v214
      %v368 = vunpack.c.l.b16 %v215
      %v369 = vunpack.c.l.b16 %v216
      %v370 = vunpack.c.l.b16 %v217
      %v371 = vunpack.c.l.b16 %v218
      %v372 = vunpack.c.l.b16 %v219
      %v373 = vpack.c.b16 %v365, %v364
      %v374 = vpack.c.b16 %v367, %v366
      %v375 = vpack.c.b16 %v369, %v368
      %v376 = vpack.c.b16 %v371, %v370
      %v377 = vpack.c.b16 %v372, %v372
      %v380 = vunpack.c.l.b16 %v230
      %v381 = vunpack.c.l.b16 %v231
      %v382 = vpack.c.b16 %v381, %v380
      %v384 = vsel %vm263, %v373, 0
      %v387 = vsel %vm263, %v374, 0
      %v390 = vsel %vm263, %v375, 0
      %v393 = vsel %vm263, %v376, 0
      %v396 = vsel %vm263, %v377, 0
      %v399 = vsel %vm279, %v382, 0
      %401 = vmatprep.subr.bf16.mxu0 0
      %402 = vmatpush1.bf16.msra.mxu0 %v399
      %403 = vmatprep.subr.bf16.mxu0 0
      %404 = vmatpush1.bf16.msra.mxu0 0
      %405 = vmatprep.subr.bf16.mxu0 0
      %406 = vmatpush1.bf16.msra.mxu0 0
      %407 = vmatprep.subr.bf16.mxu0 0
      %408 = vmatpush1.bf16.msra.mxu0 0
      %409 = vmatprep.subr.bf16.mxu0 0
      %410 = vmatpush1.bf16.msra.mxu0 0
      %411 = vmatprep.subr.bf16.mxu0 0
      %412 = vmatpush1.bf16.msra.mxu0 0
      %413 = vmatprep.subr.bf16.mxu0 0
      %414 = vmatpush1.bf16.msra.mxu0 0
      %415 = vmatprep.subr.bf16.mxu0 0
      %416 = vmatpush1.bf16.msra.mxu0 0
      %417 = vmatprep.subr.bf16.mxu0 0
      %418 = vmatpush1.bf16.msra.mxu0 0
      %419 = vmatprep.subr.bf16.mxu0 0
      %420 = vmatpush1.bf16.msra.mxu0 0
      %421 = vmatprep.subr.bf16.mxu0 0
      %422 = vmatpush1.bf16.msra.mxu0 0
      %423 = vmatprep.subr.bf16.mxu0 0
      %424 = vmatpush1.bf16.msra.mxu0 0
      %425 = vmatprep.subr.bf16.mxu0 0
      %426 = vmatpush1.bf16.msra.mxu0 0
      %427 = vmatprep.subr.bf16.mxu0 0
      %428 = vmatpush1.bf16.msra.mxu0 0
      %429 = vmatprep.subr.bf16.mxu0 0
      %430 = vmatpush1.bf16.msra.mxu0 0
      %431 = vmatprep.subr.bf16.mxu0 0
      %432 = vmatpush1.bf16.msra.mxu0 0
      %433 = vmatprep.mubr.bf16.mxu0 0
      %434 = vmatmul.mubr.bf16.gmra.mrb[0].mxu0 %v384
      %v435 = vpop.f32.mrb[0].mxu0
      %v436 = vadd.f32 %v318, %v435
      %v437 = vpop.f32.mrb[0].mxu0
      %v438 = vpop.f32.mrb[0].mxu0
      %v439 = vadd.f32 %v321, %v438
      %v440 = vpop.f32.mrb[0].mxu0
      %441 = vmatprep.mubr.bf16.mxu0 0
      %442 = vmatmul.mubr.bf16.gmra.mrb[0].mxu0 %v387
      %v443 = vpop.f32.mrb[0].mxu0
      %v444 = vadd.f32 %v326, %v443
      %v445 = vpop.f32.mrb[0].mxu0
      %v446 = vpop.f32.mrb[0].mxu0
      %v447 = vadd.f32 %v329, %v446
      %v448 = vpop.f32.mrb[0].mxu0
      %449 = vmatprep.mubr.bf16.mxu0 0
      %450 = vmatmul.mubr.bf16.gmra.mrb[0].mxu0 %v390
      %v451 = vpop.f32.mrb[0].mxu0
      %v452 = vadd.f32 %v334, %v451
      %v453 = vpop.f32.mrb[0].mxu0
      %v454 = vpop.f32.mrb[0].mxu0
      %v455 = vadd.f32 %v337, %v454
      %v456 = vpop.f32.mrb[0].mxu0
      %457 = vmatprep.mubr.bf16.mxu0 0
      %458 = vmatmul.mubr.bf16.gmra.mrb[0].mxu0 %v393
      %v459 = vpop.f32.mrb[0].mxu0
      %v460 = vadd.f32 %v342, %v459
      %v461 = vpop.f32.mrb[0].mxu0
      %v462 = vpop.f32.mrb[0].mxu0
      %v463 = vadd.f32 %v345, %v462
      %v464 = vpop.f32.mrb[0].mxu0
      %465 = vmatprep.mubr.bf16.mxu0 0
      %466 = vmatmul.mubr.bf16.gmra.mrb[0].mxu0 %v396
      %v467 = vpop.f32.mrb[0].mxu0
      %v468 = vadd.f32 %v350, %v467
      %v469 = vpop.f32.mrb[0].mxu0
      %v470 = vpop.f32.mrb[0].mxu0
      %v471 = vpop.f32.mrb[0].mxu0
      %472 = vdwg.mxu0
      %s473 = scalar_lea.vmem %s1, 16
      %v474 = vld [vmem:[%s473] sm:$0xf]
      %v475 = vld [vmem:[%s473 + $0x4] sm:$0x3]
      %v478 = vunpack.c.l.b16 %v474
      %v479 = vunpack.c.l.b16 %v475
      %v480 = vpack.c.b16 %v479, %v478
      %v482 = vsel %vm279, %v480, 0
      %484 = vmatprep.subr.bf16.mxu0 0
      %485 = vmatpush1.bf16.msra.mxu0 %v482
      %486 = vmatprep.subr.bf16.mxu0 0
      %487 = vmatpush1.bf16.msra.mxu0 0
      %488 = vmatprep.subr.bf16.mxu0 0
      %489 = vmatpush1.bf16.msra.mxu0 0
      %490 = vmatprep.subr.bf16.mxu0 0
      %491 = vmatpush1.bf16.msra.mxu0 0
      %492 = vmatprep.subr.bf16.mxu0 0
      %493 = vmatpush1.bf16.msra.mxu0 0
      %494 = vmatprep.subr.bf16.mxu0 0
      %495 = vmatpush1.bf16.msra.mxu0 0
      %496 = vmatprep.subr.bf16.mxu0 0
      %497 = vmatpush1.bf16.msra.mxu0 0
      %498 = vmatprep.subr.bf16.mxu0 0
      %499 = vmatpush1.bf16.msra.mxu0 0
      %500 = vmatprep.subr.bf16.mxu0 0
      %501 = vmatpush1.bf16.msra.mxu0 0
      %502 = vmatprep.subr.bf16.mxu0 0
      %503 = vmatpush1.bf16.msra.mxu0 0
      %504 = vmatprep.subr.bf16.mxu0 0
      %505 = vmatpush1.bf16.msra.mxu0 0
      %506 = vmatprep.subr.bf16.mxu0 0
      %507 = vmatpush1.bf16.msra.mxu0 0
      %508 = vmatprep.subr.bf16.mxu0 0
      %509 = vmatpush1.bf16.msra.mxu0 0
      %510 = vmatprep.subr.bf16.mxu0 0
      %511 = vmatpush1.bf16.msra.mxu0 0
      %512 = vmatprep.subr.bf16.mxu0 0
      %513 = vmatpush1.bf16.msra.mxu0 0
      %514 = vmatprep.subr.bf16.mxu0 0
      %515 = vmatpush1.bf16.msra.mxu0 0
      %516 = vmatprep.mubr.bf16.mxu0 0
      %517 = vmatmul.mubr.bf16.gmra.mrb[0].mxu0 %v384
      %v518 = vpop.f32.mrb[0].mxu0
      %v519 = vadd.f32 0.0, %v518
      %v520 = vpop.f32.mrb[0].mxu0
      %v521 = vpop.f32.mrb[0].mxu0
      %v522 = vadd.f32 0.0, %v521
      %v523 = vpop.f32.mrb[0].mxu0
      %524 = vmatprep.mubr.bf16.mxu0 0
      %525 = vmatmul.mubr.bf16.gmra.mrb[0].mxu0 %v387
      %v526 = vpop.f32.mrb[0].mxu0
      %v527 = vadd.f32 0.0, %v526
      %v528 = vpop.f32.mrb[0].mxu0
      %v529 = vpop.f32.mrb[0].mxu0
      %v530 = vadd.f32 0.0, %v529
      %v531 = vpop.f32.mrb[0].mxu0
      %532 = vmatprep.mubr.bf16.mxu0 0
      %533 = vmatmul.mubr.bf16.gmra.mrb[0].mxu0 %v390
      %v534 = vpop.f32.mrb[0].mxu0
      %v535 = vadd.f32 0.0, %v534
      %v536 = vpop.f32.mrb[0].mxu0
      %v537 = vpop.f32.mrb[0].mxu0
      %v538 = vadd.f32 0.0, %v537
      %v539 = vpop.f32.mrb[0].mxu0
      %540 = vmatprep.mubr.bf16.mxu0 0
      %541 = vmatmul.mubr.bf16.gmra.mrb[0].mxu0 %v393
      %v542 = vpop.f32.mrb[0].mxu0
      %v543 = vadd.f32 0.0, %v542
      %v544 = vpop.f32.mrb[0].mxu0
      %v545 = vpop.f32.mrb[0].mxu0
      %v546 = vadd.f32 0.0, %v545
      %v547 = vpop.f32.mrb[0].mxu0
      %548 = vmatprep.mubr.bf16.mxu0 0
      %549 = vmatmul.mubr.bf16.gmra.mrb[0].mxu0 %v396
      %v550 = vpop.f32.mrb[0].mxu0
      %v551 = vadd.f32 0.0, %v550
      %v552 = vpop.f32.mrb[0].mxu0
      %v553 = vpop.f32.mrb[0].mxu0
      %v554 = vpop.f32.mrb[0].mxu0
      %555 = vdwg.mxu0
      %556 = vst [vmem:[#allocation2 + $0x48] sm:$0x1] 0.0
      %557 = vst [vmem:[#allocation2] sm:$0xff] %v519
      %558 = vst [vmem:[#allocation2 + $0x8] sm:$0xff] %v522
      %559 = vst [vmem:[#allocation2 + $0x10] sm:$0xff] %v527
      %560 = vst [vmem:[#allocation2 + $0x18] sm:$0xff] %v530
      %561 = vst [vmem:[#allocation2 + $0x20] sm:$0xff] %v535
      %562 = vst [vmem:[#allocation2 + $0x28] sm:$0xff] %v538
      %563 = vst [vmem:[#allocation2 + $0x30] sm:$0xff] %v543
      %564 = vst [vmem:[#allocation2 + $0x38] sm:$0xff] %v546
      %565 = vst [vmem:[#allocation2 + $0x40] sm:$0xff] %v551
      %v566 = vld [vmem:[#allocation2 + $0x1] sm:$0xff]
      %v567 = vld [vmem:[#allocation2 + $0x9] sm:$0xff]
      %v568 = vld [vmem:[#allocation2 + $0x11] sm:$0xff]
      %v569 = vld [vmem:[#allocation2 + $0x19] sm:$0xff]
      %v570 = vld [vmem:[#allocation2 + $0x21] sm:$0xff]
      %v571 = vld [vmem:[#allocation2 + $0x29] sm:$0xff]
      %v572 = vld [vmem:[#allocation2 + $0x31] sm:$0xff]
      %v573 = vld [vmem:[#allocation2 + $0x39] sm:$0xff]
      %v574 = vld [vmem:[#allocation2 + $0x41] sm:$0xff]
      %v575 = vadd.f32 %v436, %v566
      %v576 = vadd.f32 %v439, %v567
      %v577 = vadd.f32 %v444, %v568
      %v578 = vadd.f32 %v447, %v569
      %v579 = vadd.f32 %v452, %v570
      %v580 = vadd.f32 %v455, %v571
      %v581 = vadd.f32 %v460, %v572
      %v582 = vadd.f32 %v463, %v573
      %v583 = vadd.f32 %v468, %v574
      %v584 = vld [vmem:[%s2] sm:$0x1]
      %v585 = vunpack.c.l.bf16 %v584
      %v586 = vlaneseq
      %v587 = vshrl.u32 %v586, 7
      %v588 = vsub.s32 0, %v587
      %v589 = vrot.slane %v585, %v588
      %v590 = vadd.f32 %v575, %v589
      %v591 = vadd.f32 %v576, %v589
      %v592 = vadd.f32 %v577, %v589
      %v593 = vadd.f32 %v578, %v589
      %v594 = vadd.f32 %v579, %v589
      %v595 = vadd.f32 %v580, %v589
      %v596 = vadd.f32 %v581, %v589
      %v597 = vadd.f32 %v582, %v589
      %v598 = vadd.f32 %v583, %v589
      %599 = vst [vmem:[%s208] sm:$0xff] %v590
      %600 = vst [vmem:[%s208 + $0x8] sm:$0xff] %v591
      %601 = vst [vmem:[%s208 + $0x10] sm:$0xff] %v592
      %602 = vst [vmem:[%s208 + $0x18] sm:$0xff] %v593
      %603 = vst [vmem:[%s208 + $0x20] sm:$0xff] %v594
      %604 = vst [vmem:[%s208 + $0x28] sm:$0xff] %v595
      %605 = vst [vmem:[%s208 + $0x30] sm:$0xff] %v596
      %606 = vst [vmem:[%s208 + $0x38] sm:$0xff] %v597
      %607 = vst [vmem:[%s208 + $0x40] sm:$0xff] %v598
      %s608 = smul.u32 9, %s19
      %p609 = scmp.lt.s32.totalorder %s18, 1
      %s610 = scalar_select %p609, %s18, 1
      %p611 = scmp.lt.s32.totalorder %s608, 8
      %s612 = scalar_select %p611, %s608, 8
      %s613 = smul.addr %s610, 9
      %s614 = sadd.s32 %s612, %s613
      %s615 = smul.addr %s614, 8
      %s616 = scalar_lea.vmem %s3, %s615
      // Predicated region
      $region33: #{downsample_conv2d.1} parent=31 // pred_check
        %p617 = pneg %p116
      $region34: #{downsample_conv2d.1} parent=31 // pred_check_branch
        %619 = sbr.rel (%p617) target = $region36
      $region35: #{downsample_conv2d.1} parent=31 // pred_region
        %s620 = smul.u32 9, %s19
      $region36: #{downsample_conv2d.1} parent=31 // pred_fallthru
        _
    $region32: #{downsample_conv2d.1} parent=5 // pred_fallthru
      _
    %p621 = scmp.le.s32.totalorder 2, %s9
    // Predicated region
    $region37: #{downsample_conv2d.1} parent=5 // pred_check
      %p622 = pneg %p621
    $region38: #{downsample_conv2d.1} parent=5 // pred_check_branch
      %624 = sbr.rel (%p622) target = $region40
    $region39: #{downsample_conv2d.1} parent=5 // pred_region
      %s625 = ssub.s32 %s9, 2
      // Predicated region
      $region41: #{downsample_conv2d.1} parent=39 // pred_check
        %p626 = pneg %p122
      $region42: #{downsample_conv2d.1} parent=39 // pred_check_branch
        %628 = sbr.rel (%p626) target = $region44
      $region43: #{downsample_conv2d.1} parent=39 // pred_region
        %s629 = smul.u32 9, %s21
        %p630 = scmp.lt.s32.totalorder %s20, 1
        %s631 = scalar_select %p630, %s20, 1
        %p632 = scmp.lt.s32.totalorder %s629, 8
        %s633 = scalar_select %p632, %s629, 8
        %s634 = smul.addr %s631, 9
        %s635 = sadd.s32 %s633, %s634
        %s636 = smul.addr %s635, 8
        %s637 = scalar_lea.vmem %s3, %s636
      $region44: #{downsample_conv2d.1} parent=39 // pred_fallthru
        _
    $region40: #{downsample_conv2d.1} parent=5 // pred_fallthru
      _
  $region6: #{downsample_conv2d.1} parent=0 // loop_footer
    %s13 = sadd.s32 1, %s9
  $region7: #{downsample_conv2d.1} parent=0 // loop_footer_branch
    %8 = sbr.rel target = $region3
  $region8: #{downsample_conv2d.1} parent=0 // loop_exit
    _

</llo_original>
